<compile_context>
chip_gen: v7x
topology: tpu7x:2x2x1
jax: 0.10.0
libtpu: 0.0.40
codegen_flags: <defaults>
</compile_context>

<pallas_src>
import jax
import jax.numpy as jnp
from jax.experimental import pallas as pl
from jax.experimental.pallas import tpu as pltpu

_LANE = 128
_SUBLANE = 8


def _round_up(x, m):
    return ((x + m - 1) // m) * m


def _generator_kernel(labels_ref, noise_ref,
                      w1n_ref, w1e_ref, b1_ref,
                      w2_ref, b2_ref, w3_ref, b3_ref, o_ref):
    # labels: [tb, 1] i32       noise: [tb, L] f32
    # w1n:    [L, 256]    bf16  (rows of W1 hit by the noise half)
    # w1e:    [Cpad, 256] bf16  (embedding table folded into W1: emb @ W1[L:])
    # w2:     [256, 512]  bf16  w3: [512, Dpad] bf16 (zero-padded lanes)
    # biases: f32 [1, out]      o:  [tb, Dpad] f32 (lane-dense -> unmasked vst)
    tb = noise_ref.shape[0]
    c_pad = w1e_ref.shape[0]

    # --- Label path: one-hot (bf16, exact 0/1) against the pre-folded table.
    labels = labels_ref[...]                                          # [tb, 1]
    class_ids = jax.lax.broadcasted_iota(jnp.int32, (tb, c_pad), 1)
    onehot = (labels == class_ids).astype(jnp.bfloat16)               # [tb, Cp]

    # --- Layer 1: two INDEPENDENT small-K bf16 matmuls (split-K concat).
    h1 = (jnp.dot(noise_ref[...].astype(jnp.bfloat16), w1n_ref[...],
                  preferred_element_type=jnp.float32)
          + jnp.dot(onehot, w1e_ref[...],
                    preferred_element_type=jnp.float32)
          + b1_ref[...])
    h1 = jnp.maximum(h1, 0.2 * h1)                                    # LeakyReLU(0.2)

    # --- Layer 2.
    h2 = jnp.dot(h1.astype(jnp.bfloat16), w2_ref[...],
                 preferred_element_type=jnp.float32) + b2_ref[...]
    h2 = jnp.maximum(h2, 0.2 * h2)                                    # LeakyReLU(0.2)

    # --- Layer 3 + Sigmoid (lane-dense output).
    h3 = jnp.dot(h2.astype(jnp.bfloat16), w3_ref[...],
                 preferred_element_type=jnp.float32) + b3_ref[...]
    o_ref[...] = jax.nn.sigmoid(h3).astype(o_ref.dtype)


def generator_forward(noise, labels, params, *, out_dim):
    """Fully fused Generator forward (embedding + concat + MLP)."""
    w1n, w1e_eff, b1, w2, b2, w3p, b3p = params
    B, latent = noise.shape
    out_pad = w3p.shape[1]

    # --- Batch tiling: choose tile COUNT first, then tile size. ---
    b8 = _round_up(B, _SUBLANE)
    # >= 2 tiles when there is enough work (v7x: shard across both TCs via the
    # "parallel" batch axis); tiles capped at 1024 rows.
    nt = max(pl.cdiv(b8, 1024), 2 if b8 >= 2 * _SUBLANE else 1)
    tile_b = _round_up(pl.cdiv(b8, nt), _SUBLANE)
    nt = pl.cdiv(b8, tile_b)
    b_pad = nt * tile_b

    if b_pad != B:
        noise = jnp.pad(noise, ((0, b_pad - B), (0, 0)))
        labels = jnp.pad(labels, ((0, b_pad - B),))
    labels2d = labels.astype(jnp.int32).reshape(b_pad, 1)

    # Weights / biases: constant block index -> VMEM-resident across tiles.
    full = lambda a: pl.BlockSpec(a.shape, lambda i: (0,) * a.ndim)

    out = pl.pallas_call(
        _generator_kernel,
        out_shape=jax.ShapeDtypeStruct((b_pad, out_pad), jnp.float32),
        grid_spec=pltpu.PrefetchScalarGridSpec(
            num_scalar_prefetch=0,
            grid=(nt,),
            in_specs=[
                pl.BlockSpec((tile_b, 1), lambda i: (i, 0)),       # labels
                pl.BlockSpec((tile_b, latent), lambda i: (i, 0)),  # noise
                full(w1n), full(w1e_eff), full(b1),
                full(w2), full(b2),
                full(w3p), full(b3p),
            ],
            out_specs=pl.BlockSpec((tile_b, out_pad), lambda i: (i, 0)),
        ),
        compiler_params=pltpu.CompilerParams(
            dimension_semantics=("parallel",)),
    )(labels2d, noise, w1n, w1e_eff, b1, w2, b2, w3p, b3p)

    return out[:B, :out_dim]


class GeneratorPallas:
    """JAX/Pallas port of the PyTorch `Generator` module."""

    def __init__(self, latent_dim, num_classes, input_dim, key):
        self.latent_dim = latent_dim
        self.num_classes = num_classes
        self.input_dim = input_dim

        ks = jax.random.split(key, 7)

        # nn.Embedding default init: N(0, 1).
        emb = jax.random.normal(ks[0], (num_classes, latent_dim), jnp.float32)

        def linear_init(kw, kb, fan_in, fan_out):
            # PyTorch nn.Linear default: U(-1/sqrt(fan_in), 1/sqrt(fan_in)).
            bound = 1.0 / float(fan_in) ** 0.5
            w = jax.random.uniform(kw, (fan_in, fan_out), jnp.float32,
                                   -bound, bound)        # stored as [in, out]
            b = jax.random.uniform(kb, (1, fan_out), jnp.float32, -bound, bound)
            return w, b

        in0 = latent_dim + latent_dim
        w1, b1 = linear_init(ks[1], ks[2], in0, 256)
        w2, b2 = linear_init(ks[3], ks[4], 256, 512)
        w3, b3 = linear_init(ks[5], ks[6], 512, input_dim)

        # Full-precision copies (reference / training-side use).
        self.emb_f32, self.w1_f32, self.b1_f32 = emb, w1, b1
        self.w2_f32, self.b2_f32 = w2, b2
        self.w3_f32, self.b3_f32 = w3, b3

        # --- Kernel parameters. ---
        w1n = w1[:latent_dim]            # rows hit by the noise half
        w1e = w1[latent_dim:]            # rows hit by the label embedding
        # Fold the embedding table into layer 1 (f32 compute, bf16 store);
        # pad the class axis to a sublane multiple (padded rows are zero and
        # never selected).
        w1e_eff = emb @ w1e                                    # [C, 256]
        c_pad = _round_up(num_classes, _SUBLANE)
        w1e_eff = jnp.pad(w1e_eff, ((0, c_pad - num_classes), (0, 0)))

        self.w1n = w1n.astype(jnp.bfloat16)
        self.w1e_eff = w1e_eff.astype(jnp.bfloat16)
        self.b1 = b1
        self.w2 = w2.astype(jnp.bfloat16)
        self.b2 = b2
        # Lane-pad the final layer to a multiple of 128 with zero columns so
        # stores are unmasked; padded lanes are sliced off in the wrapper.
        out_pad = _round_up(input_dim, _LANE)
        self.w3 = jnp.pad(
            w3, ((0, 0), (0, out_pad - input_dim))).astype(jnp.bfloat16)
        self.b3 = jnp.pad(b3, ((0, 0), (0, out_pad - input_dim)))

    def __call__(self, noise, labels):
        params = (self.w1n, self.w1e_eff, self.b1,
                  self.w2, self.b2, self.w3, self.b3)
        return generator_forward(noise, labels, params,
                                 out_dim=self.input_dim)


def _reference_forward_mixed(gen, noise, labels):
    """Pure-JAX mirror of the kernel math (same bf16 params, f32 accumulate)."""
    emb_row = jnp.take(gen.w1e_eff, labels, axis=0).astype(jnp.float32)
    h = (jnp.dot(noise.astype(jnp.bfloat16), gen.w1n,
                 preferred_element_type=jnp.float32)
         + emb_row + gen.b1)
    h = jnp.maximum(h, 0.2 * h)
    h = jnp.dot(h.astype(jnp.bfloat16), gen.w2,
                preferred_element_type=jnp.float32) + gen.b2
    h = jnp.maximum(h, 0.2 * h)
    h = jnp.dot(h.astype(jnp.bfloat16), gen.w3,
                preferred_element_type=jnp.float32) + gen.b3
    return jax.nn.sigmoid(h)[:, :gen.input_dim]


def _reference_forward_f32(gen, noise, labels):
    """PyTorch-semantics reference in full f32 (embedding -> concat -> MLP)."""
    emb = jnp.take(gen.emb_f32, labels, axis=0)
    x = jnp.concatenate([noise, emb], axis=1)
    h = x @ gen.w1_f32 + gen.b1_f32
    h = jnp.where(h > 0, h, 0.2 * h)
    h = h @ gen.w2_f32 + gen.b2_f32
    h = jnp.where(h > 0, h, 0.2 * h)
    h = h @ gen.w3_f32 + gen.b3_f32
    return jax.nn.sigmoid(h)


if __name__ == "__main__":
    latent_dim = 32
    num_classes = 10
    input_dim = 64
    batch = 8

    key = jax.random.PRNGKey(0)
    k_params, k_noise, k_labels = jax.random.split(key, 3)

    gen = GeneratorPallas(latent_dim, num_classes, input_dim, k_params)

    noise = jax.random.normal(k_noise, (batch, latent_dim), dtype=jnp.float32)
    labels = jax.random.randint(k_labels, (batch,), 0, num_classes,
                                dtype=jnp.int32)

    out = gen(noise, labels)
    out = jax.block_until_ready(out)

    assert out.shape == (batch, input_dim)
    assert bool(jnp.all(jnp.isfinite(out)))

    ref_mixed = _reference_forward_mixed(gen, noise, labels)
    assert jnp.allclose(out, ref_mixed, atol=5e-3, rtol=5e-3)

    ref_f32 = _reference_forward_f32(gen, noise, labels)
    assert jnp.allclose(out, ref_f32, atol=3e-2, rtol=3e-2)

    print("KERNEL_OK")
</pallas_src>

<mosaic_0001>
module attributes {stable_mosaic.version = 11 : i64} {
  func.func @_generator_kernel(%arg0: i32, %arg1: memref<8x1xi32, #tpu.memory_space<vmem>>, %arg2: memref<8x32xf32, #tpu.memory_space<vmem>>, %arg3: memref<32x256xbf16, #tpu.memory_space<vmem>>, %arg4: memref<16x256xbf16, #tpu.memory_space<vmem>>, %arg5: memref<1x256xf32, #tpu.memory_space<vmem>>, %arg6: memref<256x512xbf16, #tpu.memory_space<vmem>>, %arg7: memref<1x512xf32, #tpu.memory_space<vmem>>, %arg8: memref<512x128xbf16, #tpu.memory_space<vmem>>, %arg9: memref<1x128xf32, #tpu.memory_space<vmem>>, %arg10: memref<8x128xf32, #tpu.memory_space<vmem>>) attributes {dimension_semantics = [#tpu.dimension_semantics<parallel>], iteration_bounds = array<i64: 1>, scalar_prefetch = 0 : i64, scratch_operands = 0 : i64, tpu.core_type = #tpu.core_type<tc>, window_params = [{transform_indices = @transform_0, window_bounds = array<i64: 8, 1>}, {transform_indices = @transform_1, window_bounds = array<i64: 8, 32>}, {pipeline_mode = #tpu.pipeline_mode<synchronous>, transform_indices = @transform_2, window_bounds = array<i64: 32, 256>}, {pipeline_mode = #tpu.pipeline_mode<synchronous>, transform_indices = @transform_3, window_bounds = array<i64: 16, 256>}, {pipeline_mode = #tpu.pipeline_mode<synchronous>, transform_indices = @transform_4, window_bounds = array<i64: 1, 256>}, {pipeline_mode = #tpu.pipeline_mode<synchronous>, transform_indices = @transform_5, window_bounds = array<i64: 256, 512>}, {pipeline_mode = #tpu.pipeline_mode<synchronous>, transform_indices = @transform_6, window_bounds = array<i64: 1, 512>}, {pipeline_mode = #tpu.pipeline_mode<synchronous>, transform_indices = @transform_7, window_bounds = array<i64: 512, 128>}, {pipeline_mode = #tpu.pipeline_mode<synchronous>, transform_indices = @transform_8, window_bounds = array<i64: 1, 128>}, {transform_indices = @transform_9, window_bounds = array<i64: 8, 128>}]} {
    %c0 = arith.constant 0 : index
    %c0_0 = arith.constant 0 : index
    %0 = vector.load %arg1[%c0, %c0_0] : memref<8x1xi32, #tpu.memory_space<vmem>>, vector<8x1xi32>
    %1 = tpu.iota {dimensions = array<i32: 1>} : vector<8x16xi32>
    %2 = vector.broadcast %0 : vector<8x1xi32> to vector<8x16xi32>
    %3 = arith.cmpi eq, %2, %1 : vector<8x16xi32>
    %4 = arith.extui %3 : vector<8x16xi1> to vector<8x16xi32>
    %5 = arith.sitofp %4 : vector<8x16xi32> to vector<8x16xf32>
    %6 = arith.truncf %5 : vector<8x16xf32> to vector<8x16xbf16>
    %c0_1 = arith.constant 0 : index
    %c0_2 = arith.constant 0 : index
    %7 = vector.load %arg2[%c0_1, %c0_2] : memref<8x32xf32, #tpu.memory_space<vmem>>, vector<8x32xf32>
    %8 = arith.truncf %7 : vector<8x32xf32> to vector<8x32xbf16>
    %c0_3 = arith.constant 0 : index
    %c0_4 = arith.constant 0 : index
    %9 = vector.load %arg3[%c0_3, %c0_4] : memref<32x256xbf16, #tpu.memory_space<vmem>>, vector<32x256xbf16>
    %cst = arith.constant dense<0.000000e+00> : vector<8x256xf32>
    %10 = tpu.matmul %8, %9, %cst {dimension_numbers = #tpu.dot_dimension_numbers<[1], [0], [0], [1], [0, 0, 1, 1], [], []>} : vector<8x32xbf16>, vector<32x256xbf16>, vector<8x256xf32> -> vector<8x256xf32>
    %c0_5 = arith.constant 0 : index
    %c0_6 = arith.constant 0 : index
    %11 = vector.load %arg4[%c0_5, %c0_6] : memref<16x256xbf16, #tpu.memory_space<vmem>>, vector<16x256xbf16>
    %cst_7 = arith.constant dense<0.000000e+00> : vector<8x256xf32>
    %12 = tpu.matmul %6, %11, %cst_7 {dimension_numbers = #tpu.dot_dimension_numbers<[1], [0], [0], [1], [0, 0, 1, 1], [], []>} : vector<8x16xbf16>, vector<16x256xbf16>, vector<8x256xf32> -> vector<8x256xf32>
    %13 = arith.addf %10, %12 : vector<8x256xf32>
    %c0_8 = arith.constant 0 : index
    %c0_9 = arith.constant 0 : index
    %14 = vector.load %arg5[%c0_8, %c0_9] : memref<1x256xf32, #tpu.memory_space<vmem>>, vector<1x256xf32>
    %15 = vector.broadcast %14 : vector<1x256xf32> to vector<8x256xf32>
    %16 = arith.addf %13, %15 : vector<8x256xf32>
    %cst_10 = arith.constant 2.000000e-01 : f32
    %17 = vector.broadcast %cst_10 : f32 to vector<8x256xf32>
    %18 = arith.mulf %17, %16 : vector<8x256xf32>
    %19 = arith.maximumf %16, %18 : vector<8x256xf32>
    %20 = arith.truncf %19 : vector<8x256xf32> to vector<8x256xbf16>
    %c0_11 = arith.constant 0 : index
    %c0_12 = arith.constant 0 : index
    %21 = vector.load %arg6[%c0_11, %c0_12] : memref<256x512xbf16, #tpu.memory_space<vmem>>, vector<256x512xbf16>
    %cst_13 = arith.constant dense<0.000000e+00> : vector<8x512xf32>
    %22 = tpu.matmul %20, %21, %cst_13 {dimension_numbers = #tpu.dot_dimension_numbers<[1], [0], [0], [1], [0, 0, 1, 1], [], []>} : vector<8x256xbf16>, vector<256x512xbf16>, vector<8x512xf32> -> vector<8x512xf32>
    %c0_14 = arith.constant 0 : index
    %c0_15 = arith.constant 0 : index
    %23 = vector.load %arg7[%c0_14, %c0_15] : memref<1x512xf32, #tpu.memory_space<vmem>>, vector<1x512xf32>
    %24 = vector.broadcast %23 : vector<1x512xf32> to vector<8x512xf32>
    %25 = arith.addf %22, %24 : vector<8x512xf32>
    %cst_16 = arith.constant 2.000000e-01 : f32
    %26 = vector.broadcast %cst_16 : f32 to vector<8x512xf32>
    %27 = arith.mulf %26, %25 : vector<8x512xf32>
    %28 = arith.maximumf %25, %27 : vector<8x512xf32>
    %29 = arith.truncf %28 : vector<8x512xf32> to vector<8x512xbf16>
    %c0_17 = arith.constant 0 : index
    %c0_18 = arith.constant 0 : index
    %30 = vector.load %arg8[%c0_17, %c0_18] : memref<512x128xbf16, #tpu.memory_space<vmem>>, vector<512x128xbf16>
    %cst_19 = arith.constant dense<0.000000e+00> : vector<8x128xf32>
    %31 = tpu.matmul %29, %30, %cst_19 {dimension_numbers = #tpu.dot_dimension_numbers<[1], [0], [0], [1], [0, 0, 1, 1], [], []>} : vector<8x512xbf16>, vector<512x128xbf16>, vector<8x128xf32> -> vector<8x128xf32>
    %c0_20 = arith.constant 0 : index
    %c0_21 = arith.constant 0 : index
    %32 = vector.load %arg9[%c0_20, %c0_21] : memref<1x128xf32, #tpu.memory_space<vmem>>, vector<1x128xf32>
    %33 = vector.broadcast %32 : vector<1x128xf32> to vector<8x128xf32>
    %34 = arith.addf %31, %33 : vector<8x128xf32>
    %35 = arith.negf %34 : vector<8x128xf32>
    %36 = math.exp %35 : vector<8x128xf32>
    %cst_22 = arith.constant 1.000000e+00 : f32
    %37 = vector.broadcast %cst_22 : f32 to vector<8x128xf32>
    %38 = arith.addf %37, %36 : vector<8x128xf32>
    %39 = arith.divf %37, %38 : vector<8x128xf32>
    %c0_23 = arith.constant 0 : index
    %c0_24 = arith.constant 0 : index
    %40 = vector.load %arg10[%c0_23, %c0_24] : memref<8x128xf32, #tpu.memory_space<vmem>>, vector<8x128xf32>
    tpu.vector_store %arg10[%c0_23, %c0_24], %39 {strides = array<i32>} : memref<8x128xf32, #tpu.memory_space<vmem>>, vector<8x128xf32>,
    return
  }
  func.func @transform_0(%arg0: i32) -> (i32, i32) {
    %c0_i32 = arith.constant 0 : i32
    %c0_i32_0 = arith.constant 0 : i32
    return %arg0, %c0_i32 : i32, i32
  }
  func.func @transform_1(%arg0: i32) -> (i32, i32) {
    %c0_i32 = arith.constant 0 : i32
    %c0_i32_0 = arith.constant 0 : i32
    return %arg0, %c0_i32 : i32, i32
  }
  func.func @transform_2(%arg0: i32) -> (i32, i32) {
    %c0_i32 = arith.constant 0 : i32
    %c0_i32_0 = arith.constant 0 : i32
    %c0_i32_1 = arith.constant 0 : i32
    return %c0_i32, %c0_i32_0 : i32, i32
  }
  func.func @transform_3(%arg0: i32) -> (i32, i32) {
    %c0_i32 = arith.constant 0 : i32
    %c0_i32_0 = arith.constant 0 : i32
    %c0_i32_1 = arith.constant 0 : i32
    return %c0_i32, %c0_i32_0 : i32, i32
  }
  func.func @transform_4(%arg0: i32) -> (i32, i32) {
    %c0_i32 = arith.constant 0 : i32
    %c0_i32_0 = arith.constant 0 : i32
    %c0_i32_1 = arith.constant 0 : i32
    return %c0_i32, %c0_i32_0 : i32, i32
  }
  func.func @transform_5(%arg0: i32) -> (i32, i32) {
    %c0_i32 = arith.constant 0 : i32
    %c0_i32_0 = arith.constant 0 : i32
    %c0_i32_1 = arith.constant 0 : i32
    return %c0_i32, %c0_i32_0 : i32, i32
  }
  func.func @transform_6(%arg0: i32) -> (i32, i32) {
    %c0_i32 = arith.constant 0 : i32
    %c0_i32_0 = arith.constant 0 : i32
    %c0_i32_1 = arith.constant 0 : i32
    return %c0_i32, %c0_i32_0 : i32, i32
  }
  func.func @transform_7(%arg0: i32) -> (i32, i32) {
    %c0_i32 = arith.constant 0 : i32
    %c0_i32_0 = arith.constant 0 : i32
    %c0_i32_1 = arith.constant 0 : i32
    return %c0_i32, %c0_i32_0 : i32, i32
  }
  func.func @transform_8(%arg0: i32) -> (i32, i32) {
    %c0_i32 = arith.constant 0 : i32
    %c0_i32_0 = arith.constant 0 : i32
    %c0_i32_1 = arith.constant 0 : i32
    return %c0_i32, %c0_i32_0 : i32, i32
  }
  func.func @transform_9(%arg0: i32) -> (i32, i32) {
    %c0_i32 = arith.constant 0 : i32
    %c0_i32_0 = arith.constant 0 : i32
    return %arg0, %c0_i32 : i32, i32
  }
}

</mosaic_0001>

<llo_original>
// kernel: tpu_custom_call.1
$region0: #{tpu_custom_call.1}
  #allocation0 [shape = 'u32[]', space=smem, size = 0x4, offset = 0x4, fixed_abs, tag = 'smem constant byte address 0x4 - core index']
  #allocation1 [shape = 'u32[144,128]{1,0:T(1,128)}', space=vmem, size = 0x12000, scoped, tag = 'internal scratch']
  %s0 = inlined_call_operand.vmem [shape: s32[8,1], index: 0, kind: input, shape index: {}]
  %s1 = inlined_call_operand.hbm [shape: f32[8,32], index: 1, kind: input, shape index: {}]
  %s2 = inlined_call_operand.hbm [shape: bf16[32,256], index: 2, kind: input, shape index: {}]
  %s3 = inlined_call_operand.vmem [shape: bf16[16,256], index: 3, kind: input, shape index: {}]
  %s4 = inlined_call_operand.vmem [shape: f32[1,256], index: 4, kind: input, shape index: {}]
  %s5 = inlined_call_operand.hbm [shape: bf16[256,512], index: 5, kind: input, shape index: {}]
  %s6 = inlined_call_operand.vmem [shape: f32[1,512], index: 6, kind: input, shape index: {}]
  %s7 = inlined_call_operand.hbm [shape: bf16[512,128], index: 7, kind: input, shape index: {}]
  %s8 = inlined_call_operand.vmem [shape: f32[1,128], index: 8, kind: input, shape index: {}]
  %s9 = inlined_call_operand.hbm [shape: f32[8,128], index: 9, kind: output, shape index: {}]
  %s10 = sld [smem:[#allocation0]]
  $region62: #{tpu_custom_call.1} parent=0
    _
  %s12 = ssub.s32 1, %s10
  %s13 = scalar_select 0, %s12, %s10
  $region1: #{tpu_custom_call.1} parent=0
    #allocation2 [shape = 'u8[4096]{0}', space=vmem, size = 0x1000, scoped, tag = 'input window, operand 1, single buffered']
    #allocation3 [shape = 's32[1]{0}', space=sflag, size = 0x4, scoped, tag = 'scoped memory for tpu_custom_call.1']
    #allocation4 [shape = 's32[1]{0}', space=sflag, size = 0x4, scoped, tag = 'scoped memory for tpu_custom_call.1']
    #allocation5 [shape = 'u8[16384]{0}', space=vmem, size = 0x4000, scoped, tag = 'input window, operand 2, single buffered']
    #allocation6 [shape = 's32[1]{0}', space=sflag, size = 0x4, scoped, tag = 'scoped memory for tpu_custom_call.1']
    #allocation7 [shape = 'u8[262144]{0}', space=vmem, size = 0x40000, scoped, tag = 'input window, operand 5, single buffered']
    #allocation8 [shape = 'u8[131072]{0}', space=vmem, size = 0x20000, scoped, tag = 'input window, operand 7, single buffered']
    #allocation9 [shape = 's32[1]{0}', space=sflag, size = 0x4, scoped, tag = 'scoped memory for tpu_custom_call.1']
    #allocation10 [shape = 'u8[4096]{0}', space=vmem, size = 0x1000, scoped, tag = 'output window, operand 0, single buffered']
    %14 = vsyncpa [#allocation3], 0
    %15 = vsyncpa [#allocation6], 0
    %16 = vsyncpa [#allocation9], 0
    %17 = vsyncpa [#allocation4], 0
    // Predicated region
    $region2: #{tpu_custom_call.1} parent=1 // pred_check
      _
    $region3: #{tpu_custom_call.1} parent=1 // pred_check_branch
      %19 = sbr.rel (0) target = $region5
    $region4: #{tpu_custom_call.1} parent=1 // pred_region
      _
    $region5: #{tpu_custom_call.1} parent=1 // pred_fallthru
      _
    // Predicated region
    $region6: #{tpu_custom_call.1} parent=1 // pred_check
      _
    $region7: #{tpu_custom_call.1} parent=1 // pred_check_branch
      %21 = sbr.rel (0) target = $region9
    $region8: #{tpu_custom_call.1} parent=1 // pred_region
      %s23 = ssub.s32 128, 128
      %24 = vsyncadd [#allocation3], %s23
      %s26 = sshll.u32 [#allocation2], 4
      %s27 = int_to_ptr.vmem [resolvable:$true] %s26
      %29 = dma.hbm_to_vmem [thread:$0]  %s1, 128, %s27, [#allocation3]
    $region9: #{tpu_custom_call.1} parent=1 // pred_fallthru
      _
    // Predicated region
    $region10: #{tpu_custom_call.1} parent=1 // pred_check
      _
    $region11: #{tpu_custom_call.1} parent=1 // pred_check_branch
      %31 = sbr.rel (0) target = $region13
    $region12: #{tpu_custom_call.1} parent=1 // pred_region
      %s33 = ssub.s32 512, 512
      %34 = vsyncadd [#allocation6], %s33
      %s35 = sshll.u32 [#allocation5], 4
      %s36 = int_to_ptr.vmem [resolvable:$true] %s35
      %41 = dma.hbm_to_vmem [thread:$0]  %s2, 512, %s36, [#allocation6], 128, 128, 8
    $region13: #{tpu_custom_call.1} parent=1 // pred_fallthru
      _
    // Predicated region
    $region14: #{tpu_custom_call.1} parent=1 // pred_check
      _
    $region15: #{tpu_custom_call.1} parent=1 // pred_check_branch
      %43 = sbr.rel (0) target = $region17
    $region16: #{tpu_custom_call.1} parent=1 // pred_region
      _
    $region17: #{tpu_custom_call.1} parent=1 // pred_fallthru
      _
    // Predicated region
    $region18: #{tpu_custom_call.1} parent=1 // pred_check
      _
    $region19: #{tpu_custom_call.1} parent=1 // pred_check_branch
      %45 = sbr.rel (0) target = $region21
    $region20: #{tpu_custom_call.1} parent=1 // pred_region
      _
    $region21: #{tpu_custom_call.1} parent=1 // pred_fallthru
      _
    // Predicated region
    $region22: #{tpu_custom_call.1} parent=1 // pred_check
      _
    $region23: #{tpu_custom_call.1} parent=1 // pred_check_branch
      %47 = sbr.rel (0) target = $region25
    $region24: #{tpu_custom_call.1} parent=1 // pred_region
      %s49 = ssub.s32 8192, 8192
      %50 = vsyncadd [#allocation6], %s49
      %s51 = sshll.u32 [#allocation7], 4
      %s52 = int_to_ptr.vmem [resolvable:$true] %s51
      %57 = dma.hbm_to_vmem [thread:$0]  %s5, 8192, %s52, [#allocation6], 256, 256, 16
    $region25: #{tpu_custom_call.1} parent=1 // pred_fallthru
      _
    // Predicated region
    $region26: #{tpu_custom_call.1} parent=1 // pred_check
      _
    $region27: #{tpu_custom_call.1} parent=1 // pred_check_branch
      %59 = sbr.rel (0) target = $region29
    $region28: #{tpu_custom_call.1} parent=1 // pred_region
      _
    $region29: #{tpu_custom_call.1} parent=1 // pred_fallthru
      _
    // Predicated region
    $region30: #{tpu_custom_call.1} parent=1 // pred_check
      _
    $region31: #{tpu_custom_call.1} parent=1 // pred_check_branch
      %61 = sbr.rel (0) target = $region33
    $region32: #{tpu_custom_call.1} parent=1 // pred_region
      %s63 = ssub.s32 4096, 4096
      %64 = vsyncadd [#allocation9], %s63
      %s65 = sshll.u32 [#allocation8], 4
      %s66 = int_to_ptr.vmem [resolvable:$true] %s65
      %71 = dma.hbm_to_vmem [thread:$0]  %s7, 4096, %s66, [#allocation9], 64, 64, 4
    $region33: #{tpu_custom_call.1} parent=1 // pred_fallthru
      _
    // Predicated region
    $region34: #{tpu_custom_call.1} parent=1 // pred_check
      _
    $region35: #{tpu_custom_call.1} parent=1 // pred_check_branch
      %73 = sbr.rel (0) target = $region37
    $region36: #{tpu_custom_call.1} parent=1 // pred_region
      _
    $region37: #{tpu_custom_call.1} parent=1 // pred_fallthru
      _
    // Predicated region
    $region38: #{tpu_custom_call.1} parent=1 // pred_check
      _
    $region39: #{tpu_custom_call.1} parent=1 // pred_check_branch
      %75 = sbr.rel (0) target = $region41
    $region40: #{tpu_custom_call.1} parent=1 // pred_region
      %76 = dma.done [#allocation3], 128
    $region41: #{tpu_custom_call.1} parent=1 // pred_fallthru
      _
    // Predicated region
    $region42: #{tpu_custom_call.1} parent=1 // pred_check
      _
    $region43: #{tpu_custom_call.1} parent=1 // pred_check_branch
      %78 = sbr.rel (0) target = $region45
    $region44: #{tpu_custom_call.1} parent=1 // pred_region
      %79 = dma.done [#allocation6], 512
    $region45: #{tpu_custom_call.1} parent=1 // pred_fallthru
      _
    // Predicated region
    $region46: #{tpu_custom_call.1} parent=1 // pred_check
      _
    $region47: #{tpu_custom_call.1} parent=1 // pred_check_branch
      %81 = sbr.rel (0) target = $region49
    $region48: #{tpu_custom_call.1} parent=1 // pred_region
      %82 = dma.done [#allocation6], 8192
    $region49: #{tpu_custom_call.1} parent=1 // pred_fallthru
      _
    // Predicated region
    $region50: #{tpu_custom_call.1} parent=1 // pred_check
      _
    $region51: #{tpu_custom_call.1} parent=1 // pred_check_branch
      %84 = sbr.rel (0) target = $region53
    $region52: #{tpu_custom_call.1} parent=1 // pred_region
      %85 = dma.done [#allocation9], 4096
    $region53: #{tpu_custom_call.1} parent=1 // pred_fallthru
      _
    %v87 = vld [vmem:[%s0] sm:$0xff]
    %v88 = vlaneseq
    %v89 = vand.u32 %v88, 127
    %90 = vset.pattern.permute.xlu0 0
    %91 = vperm.xlu0 %90, %v87
    %v92 = vpop.permute.xlu0 %91
    %vm93 = vcmp.eq.s32.totalorder %v92, %v89
    %v94 = vsel %vm93, 1, 0
    %v95 = vcvt.s32.f32 %v94
    %v96 = vpack.c.bf16 %v95, %v95
    %v97 = vld [vmem:[#allocation2] sm:$0xff]
    %v98 = vpack.c.bf16 %v97, %v97
    %v99 = vld [vmem:[#allocation5] sm:$0xff]
    %v100 = vld [vmem:[#allocation5 + $0x8] sm:$0xff]
    %v101 = vld [vmem:[#allocation5 + $0x10] sm:$0xff]
    %v102 = vld [vmem:[#allocation5 + $0x18] sm:$0xff]
    %v103 = vld [vmem:[%s3] sm:$0xff]
    %v104 = vld [vmem:[%s3 + $0x8] sm:$0xff]
    %v107 = vunpack.c.l.b16 %v103
    %v108 = vunpack.c.h.b16 %v103
    %v109 = vunpack.c.l.b16 %v104
    %v110 = vunpack.c.h.b16 %v104
    %v111 = vpack.c.b16 %v109, %v107
    %v112 = vpack.c.b16 %v110, %v108
    %vm115 = vcmask 130048
    %v117 = vsel %vm115, %v96, 0
    %119 = vmatprep.subr.bf16.mxu0 %v112
    %120 = vmatpush1.bf16.msra.mxu0 %v111
    %121 = vmatprep.subr.bf16.mxu0 0
    %122 = vmatpush1.bf16.msra.mxu0 0
    %123 = vmatprep.subr.bf16.mxu0 0
    %124 = vmatpush1.bf16.msra.mxu0 0
    %125 = vmatprep.subr.bf16.mxu0 0
    %126 = vmatpush1.bf16.msra.mxu0 0
    %127 = vmatprep.subr.bf16.mxu0 0
    %128 = vmatpush1.bf16.msra.mxu0 0
    %129 = vmatprep.subr.bf16.mxu0 0
    %130 = vmatpush1.bf16.msra.mxu0 0
    %131 = vmatprep.subr.bf16.mxu0 0
    %132 = vmatpush1.bf16.msra.mxu0 0
    %133 = vmatprep.subr.bf16.mxu0 0
    %134 = vmatpush1.bf16.msra.mxu0 0
    %135 = vmatprep.subr.bf16.mxu0 0
    %136 = vmatpush1.bf16.msra.mxu0 0
    %137 = vmatprep.subr.bf16.mxu0 0
    %138 = vmatpush1.bf16.msra.mxu0 0
    %139 = vmatprep.subr.bf16.mxu0 0
    %140 = vmatpush1.bf16.msra.mxu0 0
    %141 = vmatprep.subr.bf16.mxu0 0
    %142 = vmatpush1.bf16.msra.mxu0 0
    %143 = vmatprep.subr.bf16.mxu0 0
    %144 = vmatpush1.bf16.msra.mxu0 0
    %145 = vmatprep.subr.bf16.mxu0 0
    %146 = vmatpush1.bf16.msra.mxu0 0
    %147 = vmatprep.subr.bf16.mxu0 0
    %148 = vmatpush1.bf16.msra.mxu0 0
    %149 = vmatprep.subr.bf16.mxu0 0
    %150 = vmatpush1.bf16.msra.mxu0 0
    %151 = vmatprep.mubr.bf16.mxu0 0
    %152 = vmatmul.mubr.bf16.gmra.mrb[0].mxu0 %v117
    %v153 = vpop.f32.mrb[0].mxu0
    %v154 = vadd.f32 0.0, %v153
    %v155 = vpop.f32.mrb[0].mxu0
    %v156 = vadd.f32 0.0, %v155
    %v157 = vpop.f32.mrb[0].mxu0
    %v158 = vpop.f32.mrb[0].mxu0
    %159 = vdwg.mxu0
    %v164 = vunpack.c.l.b16 %v99
    %v165 = vunpack.c.h.b16 %v99
    %v166 = vunpack.c.l.b16 %v100
    %v167 = vunpack.c.h.b16 %v100
    %v168 = vunpack.c.l.b16 %v101
    %v169 = vunpack.c.h.b16 %v101
    %v170 = vunpack.c.l.b16 %v102
    %v171 = vunpack.c.h.b16 %v102
    %v172 = vpack.c.b16 %v166, %v164
    %v173 = vpack.c.b16 %v167, %v165
    %v174 = vpack.c.b16 %v170, %v168
    %v175 = vpack.c.b16 %v171, %v169
    %vm180 = vcmask 261120
    %v182 = vsel %vm180, %v98, 0
    %184 = vmatprep.subr.bf16.mxu0 %v173
    %185 = vmatpush1.bf16.msra.mxu0 %v172
    %186 = vmatprep.subr.bf16.mxu0 %v175
    %187 = vmatpush1.bf16.msra.mxu0 %v174
    %188 = vmatprep.subr.bf16.mxu0 0
    %189 = vmatpush1.bf16.msra.mxu0 0
    %190 = vmatprep.subr.bf16.mxu0 0
    %191 = vmatpush1.bf16.msra.mxu0 0
    %192 = vmatprep.subr.bf16.mxu0 0
    %193 = vmatpush1.bf16.msra.mxu0 0
    %194 = vmatprep.subr.bf16.mxu0 0
    %195 = vmatpush1.bf16.msra.mxu0 0
    %196 = vmatprep.subr.bf16.mxu0 0
    %197 = vmatpush1.bf16.msra.mxu0 0
    %198 = vmatprep.subr.bf16.mxu0 0
    %199 = vmatpush1.bf16.msra.mxu0 0
    %200 = vmatprep.subr.bf16.mxu0 0
    %201 = vmatpush1.bf16.msra.mxu0 0
    %202 = vmatprep.subr.bf16.mxu0 0
    %203 = vmatpush1.bf16.msra.mxu0 0
    %204 = vmatprep.subr.bf16.mxu0 0
    %205 = vmatpush1.bf16.msra.mxu0 0
    %206 = vmatprep.subr.bf16.mxu0 0
    %207 = vmatpush1.bf16.msra.mxu0 0
    %208 = vmatprep.subr.bf16.mxu0 0
    %209 = vmatpush1.bf16.msra.mxu0 0
    %210 = vmatprep.subr.bf16.mxu0 0
    %211 = vmatpush1.bf16.msra.mxu0 0
    %212 = vmatprep.subr.bf16.mxu0 0
    %213 = vmatpush1.bf16.msra.mxu0 0
    %214 = vmatprep.subr.bf16.mxu0 0
    %215 = vmatpush1.bf16.msra.mxu0 0
    %216 = vmatprep.mubr.bf16.mxu0 0
    %217 = vmatmul.mubr.bf16.gmra.mrb[0].mxu0 %v182
    %v218 = vpop.f32.mrb[0].mxu0
    %v219 = vadd.f32 %v154, %v218
    %v220 = vpop.f32.mrb[0].mxu0
    %v221 = vadd.f32 %v156, %v220
    %v222 = vpop.f32.mrb[0].mxu0
    %v223 = vpop.f32.mrb[0].mxu0
    %224 = vdwg.mxu0
    %v225 = vld [vmem:[%s4] sm:$0x3]
    %v227 = vlaneseq
    %v228 = vshrl.u32 %v227, 7
    %v229 = vsub.s32 0, %v228
    %v230 = vrot.slane %v225, %v229
    %v231 = vlaneseq
    %v232 = vshrl.u32 %v231, 7
    %v233 = vsub.s32 1, %v232
    %v234 = vrot.slane %v225, %v233
    %v237 = vadd.f32 %v219, %v230
    %v238 = vadd.f32 %v221, %v234
    %v239 = vmul.f32 %v237, 0.2
    %v240 = vmul.f32 %v238, 0.2
    %v241 = vmax.f32 %v237, %v239
    %v242 = vmax.f32 %v238, %v240
    %v243 = vpack.c.bf16 %v241, %v241
    %v244 = vpack.c.bf16 %v242, %v242
    %v245 = vld [vmem:[#allocation7] sm:$0xff]
    %v246 = vld [vmem:[#allocation7 + $0x8] sm:$0xff]
    %v247 = vld [vmem:[#allocation7 + $0x10] sm:$0xff]
    %v248 = vld [vmem:[#allocation7 + $0x18] sm:$0xff]
    %v249 = vld [vmem:[#allocation7 + $0x20] sm:$0xff]
    %v250 = vld [vmem:[#allocation7 + $0x28] sm:$0xff]
    %v251 = vld [vmem:[#allocation7 + $0x30] sm:$0xff]
    %v252 = vld [vmem:[#allocation7 + $0x38] sm:$0xff]
    %v253 = vld [vmem:[#allocation7 + $0x40] sm:$0xff]
    %v254 = vld [vmem:[#allocation7 + $0x48] sm:$0xff]
    %v255 = vld [vmem:[#allocation7 + $0x50] sm:$0xff]
    %v256 = vld [vmem:[#allocation7 + $0x58] sm:$0xff]
    %v257 = vld [vmem:[#allocation7 + $0x60] sm:$0xff]
    %v258 = vld [vmem:[#allocation7 + $0x68] sm:$0xff]
    %v259 = vld [vmem:[#allocation7 + $0x70] sm:$0xff]
    %v260 = vld [vmem:[#allocation7 + $0x78] sm:$0xff]
    %v261 = vld [vmem:[#allocation7 + $0x80] sm:$0xff]
    %v262 = vld [vmem:[#allocation7 + $0x88] sm:$0xff]
    %v263 = vld [vmem:[#allocation7 + $0x90] sm:$0xff]
    %v264 = vld [vmem:[#allocation7 + $0x98] sm:$0xff]
    %v265 = vld [vmem:[#allocation7 + $0xa0] sm:$0xff]
    %v266 = vld [vmem:[#allocation7 + $0xa8] sm:$0xff]
    %v267 = vld [vmem:[#allocation7 + $0xb0] sm:$0xff]
    %v268 = vld [vmem:[#allocation7 + $0xb8] sm:$0xff]
    %v269 = vld [vmem:[#allocation7 + $0xc0] sm:$0xff]
    %v270 = vld [vmem:[#allocation7 + $0xc8] sm:$0xff]
    %v271 = vld [vmem:[#allocation7 + $0xd0] sm:$0xff]
    %v272 = vld [vmem:[#allocation7 + $0xd8] sm:$0xff]
    %v273 = vld [vmem:[#allocation7 + $0xe0] sm:$0xff]
    %v274 = vld [vmem:[#allocation7 + $0xe8] sm:$0xff]
    %v275 = vld [vmem:[#allocation7 + $0xf0] sm:$0xff]
    %v276 = vld [vmem:[#allocation7 + $0xf8] sm:$0xff]
    %v277 = vld [vmem:[#allocation7 + $0x100] sm:$0xff]
    %v278 = vld [vmem:[#allocation7 + $0x108] sm:$0xff]
    %v279 = vld [vmem:[#allocation7 + $0x110] sm:$0xff]
    %v280 = vld [vmem:[#allocation7 + $0x118] sm:$0xff]
    %v281 = vld [vmem:[#allocation7 + $0x120] sm:$0xff]
    %v282 = vld [vmem:[#allocation7 + $0x128] sm:$0xff]
    %v283 = vld [vmem:[#allocation7 + $0x130] sm:$0xff]
    %v284 = vld [vmem:[#allocation7 + $0x138] sm:$0xff]
    %v285 = vld [vmem:[#allocation7 + $0x140] sm:$0xff]
    %v286 = vld [vmem:[#allocation7 + $0x148] sm:$0xff]
    %v287 = vld [vmem:[#allocation7 + $0x150] sm:$0xff]
    %v288 = vld [vmem:[#allocation7 + $0x158] sm:$0xff]
    %v289 = vld [vmem:[#allocation7 + $0x160] sm:$0xff]
    %v290 = vld [vmem:[#allocation7 + $0x168] sm:$0xff]
    %v291 = vld [vmem:[#allocation7 + $0x170] sm:$0xff]
    %v292 = vld [vmem:[#allocation7 + $0x178] sm:$0xff]
    %v293 = vld [vmem:[#allocation7 + $0x180] sm:$0xff]
    %v294 = vld [vmem:[#allocation7 + $0x188] sm:$0xff]
    %v295 = vld [vmem:[#allocation7 + $0x190] sm:$0xff]
    %v296 = vld [vmem:[#allocation7 + $0x198] sm:$0xff]
    %v297 = vld [vmem:[#allocation7 + $0x1a0] sm:$0xff]
    %v298 = vld [vmem:[#allocation7 + $0x1a8] sm:$0xff]
    %v299 = vld [vmem:[#allocation7 + $0x1b0] sm:$0xff]
    %v300 = vld [vmem:[#allocation7 + $0x1b8] sm:$0xff]
    %v301 = vld [vmem:[#allocation7 + $0x1c0] sm:$0xff]
    %v302 = vld [vmem:[#allocation7 + $0x1c8] sm:$0xff]
    %v303 = vld [vmem:[#allocation7 + $0x1d0] sm:$0xff]
    %v304 = vld [vmem:[#allocation7 + $0x1d8] sm:$0xff]
    %v305 = vld [vmem:[#allocation7 + $0x1e0] sm:$0xff]
    %v306 = vld [vmem:[#allocation7 + $0x1e8] sm:$0xff]
    %v307 = vld [vmem:[#allocation7 + $0x1f0] sm:$0xff]
    %v308 = vld [vmem:[#allocation7 + $0x1f8] sm:$0xff]
    %v309 = vld [vmem:[%s6] sm:$0xf]
    %v311 = vlaneseq
    %v312 = vshrl.u32 %v311, 7
    %v313 = vsub.s32 0, %v312
    %v314 = vrot.slane %v309, %v313
    %v315 = vlaneseq
    %v316 = vshrl.u32 %v315, 7
    %v317 = vsub.s32 1, %v316
    %v318 = vrot.slane %v309, %v317
    %v319 = vlaneseq
    %v320 = vshrl.u32 %v319, 7
    %v321 = vsub.s32 2, %v320
    %v322 = vrot.slane %v309, %v321
    %v323 = vlaneseq
    %v324 = vshrl.u32 %v323, 7
    %v325 = vsub.s32 3, %v324
    %v326 = vrot.slane %v309, %v325
    %v395 = vunpack.c.l.b16 %v245
    %v396 = vunpack.c.h.b16 %v245
    %v397 = vunpack.c.l.b16 %v246
    %v398 = vunpack.c.h.b16 %v246
    %v399 = vunpack.c.l.b16 %v247
    %v400 = vunpack.c.h.b16 %v247
    %v401 = vunpack.c.l.b16 %v248
    %v402 = vunpack.c.h.b16 %v248
    %v403 = vunpack.c.l.b16 %v249
    %v404 = vunpack.c.h.b16 %v249
    %v405 = vunpack.c.l.b16 %v250
    %v406 = vunpack.c.h.b16 %v250
    %v407 = vunpack.c.l.b16 %v251
    %v408 = vunpack.c.h.b16 %v251
    %v409 = vunpack.c.l.b16 %v252
    %v410 = vunpack.c.h.b16 %v252
    %v411 = vunpack.c.l.b16 %v253
    %v412 = vunpack.c.h.b16 %v253
    %v413 = vunpack.c.l.b16 %v254
    %v414 = vunpack.c.h.b16 %v254
    %v415 = vunpack.c.l.b16 %v255
    %v416 = vunpack.c.h.b16 %v255
    %v417 = vunpack.c.l.b16 %v256
    %v418 = vunpack.c.h.b16 %v256
    %v419 = vunpack.c.l.b16 %v257
    %v420 = vunpack.c.h.b16 %v257
    %v421 = vunpack.c.l.b16 %v258
    %v422 = vunpack.c.h.b16 %v258
    %v423 = vunpack.c.l.b16 %v259
    %v424 = vunpack.c.h.b16 %v259
    %v425 = vunpack.c.l.b16 %v260
    %v426 = vunpack.c.h.b16 %v260
    %v427 = vunpack.c.l.b16 %v261
    %v428 = vunpack.c.h.b16 %v261
    %v429 = vunpack.c.l.b16 %v262
    %v430 = vunpack.c.h.b16 %v262
    %v431 = vunpack.c.l.b16 %v263
    %v432 = vunpack.c.h.b16 %v263
    %v433 = vunpack.c.l.b16 %v264
    %v434 = vunpack.c.h.b16 %v264
    %v435 = vunpack.c.l.b16 %v265
    %v436 = vunpack.c.h.b16 %v265
    %v437 = vunpack.c.l.b16 %v266
    %v438 = vunpack.c.h.b16 %v266
    %v439 = vunpack.c.l.b16 %v267
    %v440 = vunpack.c.h.b16 %v267
    %v441 = vunpack.c.l.b16 %v268
    %v442 = vunpack.c.h.b16 %v268
    %v443 = vunpack.c.l.b16 %v269
    %v444 = vunpack.c.h.b16 %v269
    %v445 = vunpack.c.l.b16 %v270
    %v446 = vunpack.c.h.b16 %v270
    %v447 = vunpack.c.l.b16 %v271
    %v448 = vunpack.c.h.b16 %v271
    %v449 = vunpack.c.l.b16 %v272
    %v450 = vunpack.c.h.b16 %v272
    %v451 = vunpack.c.l.b16 %v273
    %v452 = vunpack.c.h.b16 %v273
    %v453 = vunpack.c.l.b16 %v274
    %v454 = vunpack.c.h.b16 %v274
    %v455 = vunpack.c.l.b16 %v275
    %v456 = vunpack.c.h.b16 %v275
    %v457 = vunpack.c.l.b16 %v276
    %v458 = vunpack.c.h.b16 %v276
    %v459 = vunpack.c.l.b16 %v277
    %v460 = vunpack.c.h.b16 %v277
    %v461 = vunpack.c.l.b16 %v278
    %v462 = vunpack.c.h.b16 %v278
    %v463 = vunpack.c.l.b16 %v279
    %v464 = vunpack.c.h.b16 %v279
    %v465 = vunpack.c.l.b16 %v280
    %v466 = vunpack.c.h.b16 %v280
    %v467 = vunpack.c.l.b16 %v281
    %v468 = vunpack.c.h.b16 %v281
    %v469 = vunpack.c.l.b16 %v282
    %v470 = vunpack.c.h.b16 %v282
    %v471 = vunpack.c.l.b16 %v283
    %v472 = vunpack.c.h.b16 %v283
    %v473 = vunpack.c.l.b16 %v284
    %v474 = vunpack.c.h.b16 %v284
    %v475 = vunpack.c.l.b16 %v285
    %v476 = vunpack.c.h.b16 %v285
    %v477 = vunpack.c.l.b16 %v286
    %v478 = vunpack.c.h.b16 %v286
    %v479 = vunpack.c.l.b16 %v287
    %v480 = vunpack.c.h.b16 %v287
    %v481 = vunpack.c.l.b16 %v288
    %v482 = vunpack.c.h.b16 %v288
    %v483 = vunpack.c.l.b16 %v289
    %v484 = vunpack.c.h.b16 %v289
    %v485 = vunpack.c.l.b16 %v290
    %v486 = vunpack.c.h.b16 %v290
    %v487 = vunpack.c.l.b16 %v291
    %v488 = vunpack.c.h.b16 %v291
    %v489 = vunpack.c.l.b16 %v292
    %v490 = vunpack.c.h.b16 %v292
    %v491 = vunpack.c.l.b16 %v293
    %v492 = vunpack.c.h.b16 %v293
    %v493 = vunpack.c.l.b16 %v294
    %v494 = vunpack.c.h.b16 %v294
    %v495 = vunpack.c.l.b16 %v295
    %v496 = vunpack.c.h.b16 %v295
    %v497 = vunpack.c.l.b16 %v296
    %v498 = vunpack.c.h.b16 %v296
    %v499 = vunpack.c.l.b16 %v297
    %v500 = vunpack.c.h.b16 %v297
    %v501 = vunpack.c.l.b16 %v298
    %v502 = vunpack.c.h.b16 %v298
    %v503 = vunpack.c.l.b16 %v299
    %v504 = vunpack.c.h.b16 %v299
    %v505 = vunpack.c.l.b16 %v300
    %v506 = vunpack.c.h.b16 %v300
    %v507 = vunpack.c.l.b16 %v301
    %v508 = vunpack.c.h.b16 %v301
    %v509 = vunpack.c.l.b16 %v302
    %v510 = vunpack.c.h.b16 %v302
    %v511 = vunpack.c.l.b16 %v303
    %v512 = vunpack.c.h.b16 %v303
    %v513 = vunpack.c.l.b16 %v304
    %v514 = vunpack.c.h.b16 %v304
    %v515 = vunpack.c.l.b16 %v305
    %v516 = vunpack.c.h.b16 %v305
    %v517 = vunpack.c.l.b16 %v306
    %v518 = vunpack.c.h.b16 %v306
    %v519 = vunpack.c.l.b16 %v307
    %v520 = vunpack.c.h.b16 %v307
    %v521 = vunpack.c.l.b16 %v308
    %v522 = vunpack.c.h.b16 %v308
    %v523 = vpack.c.b16 %v399, %v395
    %v524 = vpack.c.b16 %v400, %v396
    %v525 = vpack.c.b16 %v401, %v397
    %v526 = vpack.c.b16 %v402, %v398
    %v527 = vpack.c.b16 %v407, %v403
    %v528 = vpack.c.b16 %v408, %v404
    %v529 = vpack.c.b16 %v409, %v405
    %v530 = vpack.c.b16 %v410, %v406
    %v531 = vpack.c.b16 %v415, %v411
    %v532 = vpack.c.b16 %v416, %v412
    %v533 = vpack.c.b16 %v417, %v413
    %v534 = vpack.c.b16 %v418, %v414
    %v535 = vpack.c.b16 %v423, %v419
    %v536 = vpack.c.b16 %v424, %v420
    %v537 = vpack.c.b16 %v425, %v421
    %v538 = vpack.c.b16 %v426, %v422
    %v539 = vpack.c.b16 %v431, %v427
    %v540 = vpack.c.b16 %v432, %v428
    %v541 = vpack.c.b16 %v433, %v429
    %v542 = vpack.c.b16 %v434, %v430
    %v543 = vpack.c.b16 %v439, %v435
    %v544 = vpack.c.b16 %v440, %v436
    %v545 = vpack.c.b16 %v441, %v437
    %v546 = vpack.c.b16 %v442, %v438
    %v547 = vpack.c.b16 %v447, %v443
    %v548 = vpack.c.b16 %v448, %v444
    %v549 = vpack.c.b16 %v449, %v445
    %v550 = vpack.c.b16 %v450, %v446
    %v551 = vpack.c.b16 %v455, %v451
    %v552 = vpack.c.b16 %v456, %v452
    %v553 = vpack.c.b16 %v457, %v453
    %v554 = vpack.c.b16 %v458, %v454
    %v555 = vpack.c.b16 %v463, %v459
    %v556 = vpack.c.b16 %v464, %v460
    %v557 = vpack.c.b16 %v465, %v461
    %v558 = vpack.c.b16 %v466, %v462
    %v559 = vpack.c.b16 %v471, %v467
    %v560 = vpack.c.b16 %v472, %v468
    %v561 = vpack.c.b16 %v473, %v469
    %v562 = vpack.c.b16 %v474, %v470
    %v563 = vpack.c.b16 %v479, %v475
    %v564 = vpack.c.b16 %v480, %v476
    %v565 = vpack.c.b16 %v481, %v477
    %v566 = vpack.c.b16 %v482, %v478
    %v567 = vpack.c.b16 %v487, %v483
    %v568 = vpack.c.b16 %v488, %v484
    %v569 = vpack.c.b16 %v489, %v485
    %v570 = vpack.c.b16 %v490, %v486
    %v571 = vpack.c.b16 %v495, %v491
    %v572 = vpack.c.b16 %v496, %v492
    %v573 = vpack.c.b16 %v497, %v493
    %v574 = vpack.c.b16 %v498, %v494
    %v575 = vpack.c.b16 %v503, %v499
    %v576 = vpack.c.b16 %v504, %v500
    %v577 = vpack.c.b16 %v505, %v501
    %v578 = vpack.c.b16 %v506, %v502
    %v579 = vpack.c.b16 %v511, %v507
    %v580 = vpack.c.b16 %v512, %v508
    %v581 = vpack.c.b16 %v513, %v509
    %v582 = vpack.c.b16 %v514, %v510
    %v583 = vpack.c.b16 %v519, %v515
    %v584 = vpack.c.b16 %v520, %v516
    %v585 = vpack.c.b16 %v521, %v517
    %v586 = vpack.c.b16 %v522, %v518
    %651 = vmatprep.subr.bf16.mxu0 %v524
    %652 = vmatpush1.bf16.msra.mxu0 %v523
    %653 = vmatprep.subr.bf16.mxu0 %v528
    %654 = vmatpush1.bf16.msra.mxu0 %v527
    %655 = vmatprep.subr.bf16.mxu0 %v532
    %656 = vmatpush1.bf16.msra.mxu0 %v531
    %657 = vmatprep.subr.bf16.mxu0 %v536
    %658 = vmatpush1.bf16.msra.mxu0 %v535
    %659 = vmatprep.subr.bf16.mxu0 %v540
    %660 = vmatpush1.bf16.msra.mxu0 %v539
    %661 = vmatprep.subr.bf16.mxu0 %v544
    %662 = vmatpush1.bf16.msra.mxu0 %v543
    %663 = vmatprep.subr.bf16.mxu0 %v548
    %664 = vmatpush1.bf16.msra.mxu0 %v547
    %665 = vmatprep.subr.bf16.mxu0 %v552
    %666 = vmatpush1.bf16.msra.mxu0 %v551
    %667 = vmatprep.subr.bf16.mxu0 %v556
    %668 = vmatpush1.bf16.msra.mxu0 %v555
    %669 = vmatprep.subr.bf16.mxu0 %v560
    %670 = vmatpush1.bf16.msra.mxu0 %v559
    %671 = vmatprep.subr.bf16.mxu0 %v564
    %672 = vmatpush1.bf16.msra.mxu0 %v563
    %673 = vmatprep.subr.bf16.mxu0 %v568
    %674 = vmatpush1.bf16.msra.mxu0 %v567
    %675 = vmatprep.subr.bf16.mxu0 %v572
    %676 = vmatpush1.bf16.msra.mxu0 %v571
    %677 = vmatprep.subr.bf16.mxu0 %v576
    %678 = vmatpush1.bf16.msra.mxu0 %v575
    %679 = vmatprep.subr.bf16.mxu0 %v580
    %680 = vmatpush1.bf16.msra.mxu0 %v579
    %681 = vmatprep.subr.bf16.mxu0 %v584
    %682 = vmatpush1.bf16.msra.mxu0 %v583
    %683 = vmatprep.mubr.bf16.mxu0 %v244
    %684 = vmatmul.mubr.bf16.gmra.mrb[0].mxu0 %v243
    %v685 = vpop.f32.mrb[0].mxu0
    %v686 = vadd.f32 %v314, %v685
    %v687 = vpop.f32.mrb[0].mxu0
    %v688 = vadd.f32 %v318, %v687
    %v689 = vpop.f32.mrb[0].mxu0
    %v690 = vpop.f32.mrb[0].mxu0
    %691 = vdwg.mxu0
    %692 = vmatprep.subr.bf16.mxu0 %v526
    %693 = vmatpush1.bf16.msra.mxu0 %v525
    %694 = vmatprep.subr.bf16.mxu0 %v530
    %695 = vmatpush1.bf16.msra.mxu0 %v529
    %696 = vmatprep.subr.bf16.mxu0 %v534
    %697 = vmatpush1.bf16.msra.mxu0 %v533
    %698 = vmatprep.subr.bf16.mxu0 %v538
    %699 = vmatpush1.bf16.msra.mxu0 %v537
    %700 = vmatprep.subr.bf16.mxu0 %v542
    %701 = vmatpush1.bf16.msra.mxu0 %v541
    %702 = vmatprep.subr.bf16.mxu0 %v546
    %703 = vmatpush1.bf16.msra.mxu0 %v545
    %704 = vmatprep.subr.bf16.mxu0 %v550
    %705 = vmatpush1.bf16.msra.mxu0 %v549
    %706 = vmatprep.subr.bf16.mxu0 %v554
    %707 = vmatpush1.bf16.msra.mxu0 %v553
    %708 = vmatprep.subr.bf16.mxu0 %v558
    %709 = vmatpush1.bf16.msra.mxu0 %v557
    %710 = vmatprep.subr.bf16.mxu0 %v562
    %711 = vmatpush1.bf16.msra.mxu0 %v561
    %712 = vmatprep.subr.bf16.mxu0 %v566
    %713 = vmatpush1.bf16.msra.mxu0 %v565
    %714 = vmatprep.subr.bf16.mxu0 %v570
    %715 = vmatpush1.bf16.msra.mxu0 %v569
    %716 = vmatprep.subr.bf16.mxu0 %v574
    %717 = vmatpush1.bf16.msra.mxu0 %v573
    %718 = vmatprep.subr.bf16.mxu0 %v578
    %719 = vmatpush1.bf16.msra.mxu0 %v577
    %720 = vmatprep.subr.bf16.mxu0 %v582
    %721 = vmatpush1.bf16.msra.mxu0 %v581
    %722 = vmatprep.subr.bf16.mxu0 %v586
    %723 = vmatpush1.bf16.msra.mxu0 %v585
    %724 = vmatprep.mubr.bf16.mxu0 %v244
    %725 = vmatmul.mubr.bf16.gmra.mrb[0].mxu0 %v243
    %v726 = vpop.f32.mrb[0].mxu0
    %v727 = vadd.f32 %v322, %v726
    %v728 = vpop.f32.mrb[0].mxu0
    %v729 = vadd.f32 %v326, %v728
    %v730 = vpop.f32.mrb[0].mxu0
    %v731 = vpop.f32.mrb[0].mxu0
    %732 = vdwg.mxu0
    %v733 = vmul.f32 %v686, 0.2
    %v734 = vmul.f32 %v688, 0.2
    %v735 = vmul.f32 %v727, 0.2
    %v736 = vmul.f32 %v729, 0.2
    %v737 = vmax.f32 %v686, %v733
    %v738 = vmax.f32 %v688, %v734
    %v739 = vmax.f32 %v727, %v735
    %v740 = vmax.f32 %v729, %v736
    %v741 = vpack.c.bf16 %v737, %v737
    %v742 = vpack.c.bf16 %v738, %v738
    %v743 = vpack.c.bf16 %v739, %v739
    %v744 = vpack.c.bf16 %v740, %v740
    %v745 = vld [vmem:[#allocation8] sm:$0xf]
    %v746 = vld [vmem:[#allocation8 + $0x4] sm:$0xf]
    %v747 = vld [vmem:[#allocation8 + $0x8] sm:$0xf]
    %v748 = vld [vmem:[#allocation8 + $0xc] sm:$0xf]
    %v749 = vld [vmem:[#allocation8 + $0x10] sm:$0xf]
    %v750 = vld [vmem:[#allocation8 + $0x14] sm:$0xf]
    %v751 = vld [vmem:[#allocation8 + $0x18] sm:$0xf]
    %v752 = vld [vmem:[#allocation8 + $0x1c] sm:$0xf]
    %v753 = vld [vmem:[#allocation8 + $0x20] sm:$0xf]
    %v754 = vld [vmem:[#allocation8 + $0x24] sm:$0xf]
    %v755 = vld [vmem:[#allocation8 + $0x28] sm:$0xf]
    %v756 = vld [vmem:[#allocation8 + $0x2c] sm:$0xf]
    %v757 = vld [vmem:[#allocation8 + $0x30] sm:$0xf]
    %v758 = vld [vmem:[#allocation8 + $0x34] sm:$0xf]
    %v759 = vld [vmem:[#allocation8 + $0x38] sm:$0xf]
    %v760 = vld [vmem:[#allocation8 + $0x3c] sm:$0xf]
    %v761 = vld [vmem:[#allocation8 + $0x40] sm:$0xf]
    %v762 = vld [vmem:[#allocation8 + $0x44] sm:$0xf]
    %v763 = vld [vmem:[#allocation8 + $0x48] sm:$0xf]
    %v764 = vld [vmem:[#allocation8 + $0x4c] sm:$0xf]
    %v765 = vld [vmem:[#allocation8 + $0x50] sm:$0xf]
    %v766 = vld [vmem:[#allocation8 + $0x54] sm:$0xf]
    %v767 = vld [vmem:[#allocation8 + $0x58] sm:$0xf]
    %v768 = vld [vmem:[#allocation8 + $0x5c] sm:$0xf]
    %v769 = vld [vmem:[#allocation8 + $0x60] sm:$0xf]
    %v770 = vld [vmem:[#allocation8 + $0x64] sm:$0xf]
    %v771 = vld [vmem:[#allocation8 + $0x68] sm:$0xf]
    %v772 = vld [vmem:[#allocation8 + $0x6c] sm:$0xf]
    %v773 = vld [vmem:[#allocation8 + $0x70] sm:$0xf]
    %v774 = vld [vmem:[#allocation8 + $0x74] sm:$0xf]
    %v775 = vld [vmem:[#allocation8 + $0x78] sm:$0xf]
    %v776 = vld [vmem:[#allocation8 + $0x7c] sm:$0xf]
    %v777 = vld [vmem:[#allocation8 + $0x80] sm:$0xf]
    %v778 = vld [vmem:[#allocation8 + $0x84] sm:$0xf]
    %v779 = vld [vmem:[#allocation8 + $0x88] sm:$0xf]
    %v780 = vld [vmem:[#allocation8 + $0x8c] sm:$0xf]
    %v781 = vld [vmem:[#allocation8 + $0x90] sm:$0xf]
    %v782 = vld [vmem:[#allocation8 + $0x94] sm:$0xf]
    %v783 = vld [vmem:[#allocation8 + $0x98] sm:$0xf]
    %v784 = vld [vmem:[#allocation8 + $0x9c] sm:$0xf]
    %v785 = vld [vmem:[#allocation8 + $0xa0] sm:$0xf]
    %v786 = vld [vmem:[#allocation8 + $0xa4] sm:$0xf]
    %v787 = vld [vmem:[#allocation8 + $0xa8] sm:$0xf]
    %v788 = vld [vmem:[#allocation8 + $0xac] sm:$0xf]
    %v789 = vld [vmem:[#allocation8 + $0xb0] sm:$0xf]
    %v790 = vld [vmem:[#allocation8 + $0xb4] sm:$0xf]
    %v791 = vld [vmem:[#allocation8 + $0xb8] sm:$0xf]
    %v792 = vld [vmem:[#allocation8 + $0xbc] sm:$0xf]
    %v793 = vld [vmem:[#allocation8 + $0xc0] sm:$0xf]
    %v794 = vld [vmem:[#allocation8 + $0xc4] sm:$0xf]
    %v795 = vld [vmem:[#allocation8 + $0xc8] sm:$0xf]
    %v796 = vld [vmem:[#allocation8 + $0xcc] sm:$0xf]
    %v797 = vld [vmem:[#allocation8 + $0xd0] sm:$0xf]
    %v798 = vld [vmem:[#allocation8 + $0xd4] sm:$0xf]
    %v799 = vld [vmem:[#allocation8 + $0xd8] sm:$0xf]
    %v800 = vld [vmem:[#allocation8 + $0xdc] sm:$0xf]
    %v801 = vld [vmem:[#allocation8 + $0xe0] sm:$0xf]
    %v802 = vld [vmem:[#allocation8 + $0xe4] sm:$0xf]
    %v803 = vld [vmem:[#allocation8 + $0xe8] sm:$0xf]
    %v804 = vld [vmem:[#allocation8 + $0xec] sm:$0xf]
    %v805 = vld [vmem:[#allocation8 + $0xf0] sm:$0xf]
    %v806 = vld [vmem:[#allocation8 + $0xf4] sm:$0xf]
    %v807 = vld [vmem:[#allocation8 + $0xf8] sm:$0xf]
    %v808 = vld [vmem:[#allocation8 + $0xfc] sm:$0xf]
    %v809 = vld [vmem:[%s8] sm:$0x1]
    %v811 = vlaneseq
    %v812 = vshrl.u32 %v811, 7
    %v813 = vsub.s32 0, %v812
    %v814 = vrot.slane %v809, %v813
    %v880 = vunpack.c.l.b16 %v745
    %v881 = vunpack.c.l.b16 %v746
    %v882 = vunpack.c.l.b16 %v747
    %v883 = vunpack.c.l.b16 %v748
    %v884 = vunpack.c.l.b16 %v749
    %v885 = vunpack.c.l.b16 %v750
    %v886 = vunpack.c.l.b16 %v751
    %v887 = vunpack.c.l.b16 %v752
    %v888 = vunpack.c.l.b16 %v753
    %v889 = vunpack.c.l.b16 %v754
    %v890 = vunpack.c.l.b16 %v755
    %v891 = vunpack.c.l.b16 %v756
    %v892 = vunpack.c.l.b16 %v757
    %v893 = vunpack.c.l.b16 %v758
    %v894 = vunpack.c.l.b16 %v759
    %v895 = vunpack.c.l.b16 %v760
    %v896 = vunpack.c.l.b16 %v761
    %v897 = vunpack.c.l.b16 %v762
    %v898 = vunpack.c.l.b16 %v763
    %v899 = vunpack.c.l.b16 %v764
    %v900 = vunpack.c.l.b16 %v765
    %v901 = vunpack.c.l.b16 %v766
    %v902 = vunpack.c.l.b16 %v767
    %v903 = vunpack.c.l.b16 %v768
    %v904 = vunpack.c.l.b16 %v769
    %v905 = vunpack.c.l.b16 %v770
    %v906 = vunpack.c.l.b16 %v771
    %v907 = vunpack.c.l.b16 %v772
    %v908 = vunpack.c.l.b16 %v773
    %v909 = vunpack.c.l.b16 %v774
    %v910 = vunpack.c.l.b16 %v775
    %v911 = vunpack.c.l.b16 %v776
    %v912 = vunpack.c.l.b16 %v777
    %v913 = vunpack.c.l.b16 %v778
    %v914 = vunpack.c.l.b16 %v779
    %v915 = vunpack.c.l.b16 %v780
    %v916 = vunpack.c.l.b16 %v781
    %v917 = vunpack.c.l.b16 %v782
    %v918 = vunpack.c.l.b16 %v783
    %v919 = vunpack.c.l.b16 %v784
    %v920 = vunpack.c.l.b16 %v785
    %v921 = vunpack.c.l.b16 %v786
    %v922 = vunpack.c.l.b16 %v787
    %v923 = vunpack.c.l.b16 %v788
    %v924 = vunpack.c.l.b16 %v789
    %v925 = vunpack.c.l.b16 %v790
    %v926 = vunpack.c.l.b16 %v791
    %v927 = vunpack.c.l.b16 %v792
    %v928 = vunpack.c.l.b16 %v793
    %v929 = vunpack.c.l.b16 %v794
    %v930 = vunpack.c.l.b16 %v795
    %v931 = vunpack.c.l.b16 %v796
    %v932 = vunpack.c.l.b16 %v797
    %v933 = vunpack.c.l.b16 %v798
    %v934 = vunpack.c.l.b16 %v799
    %v935 = vunpack.c.l.b16 %v800
    %v936 = vunpack.c.l.b16 %v801
    %v937 = vunpack.c.l.b16 %v802
    %v938 = vunpack.c.l.b16 %v803
    %v939 = vunpack.c.l.b16 %v804
    %v940 = vunpack.c.l.b16 %v805
    %v941 = vunpack.c.l.b16 %v806
    %v942 = vunpack.c.l.b16 %v807
    %v943 = vunpack.c.l.b16 %v808
    %v944 = vpack.c.b16 %v881, %v880
    %v945 = vpack.c.b16 %v883, %v882
    %v946 = vpack.c.b16 %v885, %v884
    %v947 = vpack.c.b16 %v887, %v886
    %v948 = vpack.c.b16 %v889, %v888
    %v949 = vpack.c.b16 %v891, %v890
    %v950 = vpack.c.b16 %v893, %v892
    %v951 = vpack.c.b16 %v895, %v894
    %v952 = vpack.c.b16 %v897, %v896
    %v953 = vpack.c.b16 %v899, %v898
    %v954 = vpack.c.b16 %v901, %v900
    %v955 = vpack.c.b16 %v903, %v902
    %v956 = vpack.c.b16 %v905, %v904
    %v957 = vpack.c.b16 %v907, %v906
    %v958 = vpack.c.b16 %v909, %v908
    %v959 = vpack.c.b16 %v911, %v910
    %v960 = vpack.c.b16 %v913, %v912
    %v961 = vpack.c.b16 %v915, %v914
    %v962 = vpack.c.b16 %v917, %v916
    %v963 = vpack.c.b16 %v919, %v918
    %v964 = vpack.c.b16 %v921, %v920
    %v965 = vpack.c.b16 %v923, %v922
    %v966 = vpack.c.b16 %v925, %v924
    %v967 = vpack.c.b16 %v927, %v926
    %v968 = vpack.c.b16 %v929, %v928
    %v969 = vpack.c.b16 %v931, %v930
    %v970 = vpack.c.b16 %v933, %v932
    %v971 = vpack.c.b16 %v935, %v934
    %v972 = vpack.c.b16 %v937, %v936
    %v973 = vpack.c.b16 %v939, %v938
    %v974 = vpack.c.b16 %v941, %v940
    %v975 = vpack.c.b16 %v943, %v942
    %1008 = vmatprep.subr.bf16.mxu0 0
    %1009 = vmatpush1.bf16.msra.mxu0 %v944
    %1010 = vmatprep.subr.bf16.mxu0 0
    %1011 = vmatpush1.bf16.msra.mxu0 %v945
    %1012 = vmatprep.subr.bf16.mxu0 0
    %1013 = vmatpush1.bf16.msra.mxu0 %v946
    %1014 = vmatprep.subr.bf16.mxu0 0
    %1015 = vmatpush1.bf16.msra.mxu0 %v947
    %1016 = vmatprep.subr.bf16.mxu0 0
    %1017 = vmatpush1.bf16.msra.mxu0 %v948
    %1018 = vmatprep.subr.bf16.mxu0 0
    %1019 = vmatpush1.bf16.msra.mxu0 %v949
    %1020 = vmatprep.subr.bf16.mxu0 0
    %1021 = vmatpush1.bf16.msra.mxu0 %v950
    %1022 = vmatprep.subr.bf16.mxu0 0
    %1023 = vmatpush1.bf16.msra.mxu0 %v951
    %1024 = vmatprep.subr.bf16.mxu0 0
    %1025 = vmatpush1.bf16.msra.mxu0 %v952
    %1026 = vmatprep.subr.bf16.mxu0 0
    %1027 = vmatpush1.bf16.msra.mxu0 %v953
    %1028 = vmatprep.subr.bf16.mxu0 0
    %1029 = vmatpush1.bf16.msra.mxu0 %v954
    %1030 = vmatprep.subr.bf16.mxu0 0
    %1031 = vmatpush1.bf16.msra.mxu0 %v955
    %1032 = vmatprep.subr.bf16.mxu0 0
    %1033 = vmatpush1.bf16.msra.mxu0 %v956
    %1034 = vmatprep.subr.bf16.mxu0 0
    %1035 = vmatpush1.bf16.msra.mxu0 %v957
    %1036 = vmatprep.subr.bf16.mxu0 0
    %1037 = vmatpush1.bf16.msra.mxu0 %v958
    %1038 = vmatprep.subr.bf16.mxu0 0
    %1039 = vmatpush1.bf16.msra.mxu0 %v959
    %1040 = vmatprep.mubr.bf16.mxu0 %v742
    %1041 = vmatmul.mubr.bf16.gmra.mrb[0].mxu0 %v741
    %v1042 = vpop.f32.mrb[0].mxu0
    %v1043 = vadd.f32 %v814, %v1042
    %v1044 = vpop.f32.mrb[0].mxu0
    %v1045 = vpop.f32.mrb[0].mxu0
    %v1046 = vpop.f32.mrb[0].mxu0
    %1047 = vdwg.mxu0
    %1048 = vmatprep.subr.bf16.mxu0 0
    %1049 = vmatpush1.bf16.msra.mxu0 %v960
    %1050 = vmatprep.subr.bf16.mxu0 0
    %1051 = vmatpush1.bf16.msra.mxu0 %v961
    %1052 = vmatprep.subr.bf16.mxu0 0
    %1053 = vmatpush1.bf16.msra.mxu0 %v962
    %1054 = vmatprep.subr.bf16.mxu0 0
    %1055 = vmatpush1.bf16.msra.mxu0 %v963
    %1056 = vmatprep.subr.bf16.mxu0 0
    %1057 = vmatpush1.bf16.msra.mxu0 %v964
    %1058 = vmatprep.subr.bf16.mxu0 0
    %1059 = vmatpush1.bf16.msra.mxu0 %v965
    %1060 = vmatprep.subr.bf16.mxu0 0
    %1061 = vmatpush1.bf16.msra.mxu0 %v966
    %1062 = vmatprep.subr.bf16.mxu0 0
    %1063 = vmatpush1.bf16.msra.mxu0 %v967
    %1064 = vmatprep.subr.bf16.mxu0 0
    %1065 = vmatpush1.bf16.msra.mxu0 %v968
    %1066 = vmatprep.subr.bf16.mxu0 0
    %1067 = vmatpush1.bf16.msra.mxu0 %v969
    %1068 = vmatprep.subr.bf16.mxu0 0
    %1069 = vmatpush1.bf16.msra.mxu0 %v970
    %1070 = vmatprep.subr.bf16.mxu0 0
    %1071 = vmatpush1.bf16.msra.mxu0 %v971
    %1072 = vmatprep.subr.bf16.mxu0 0
    %1073 = vmatpush1.bf16.msra.mxu0 %v972
    %1074 = vmatprep.subr.bf16.mxu0 0
    %1075 = vmatpush1.bf16.msra.mxu0 %v973
    %1076 = vmatprep.subr.bf16.mxu0 0
    %1077 = vmatpush1.bf16.msra.mxu0 %v974
    %1078 = vmatprep.subr.bf16.mxu0 0
    %1079 = vmatpush1.bf16.msra.mxu0 %v975
    %1080 = vmatprep.mubr.bf16.mxu0 %v744
    %1081 = vmatmul.mubr.bf16.gmra.mrb[0].mxu0 %v743
    %v1082 = vpop.f32.mrb[0].mxu0
    %v1083 = vadd.f32 %v1043, %v1082
    %v1084 = vpop.f32.mrb[0].mxu0
    %v1085 = vpop.f32.mrb[0].mxu0
    %v1086 = vpop.f32.mrb[0].mxu0
    %1087 = vdwg.mxu0
    %v1088 = vxor.u32 %v1083, 2147483648
    %v1089 = vmul.f32 %v1088, 1.442695
    %v1090 = vpow.pop %v1089
    %v1091 = vadd.f32 %v1090, 1.0
    %v1092 = vrcp.pop %v1091
    %v1093 = vmul.f32 1.0, %v1092
    %1094 = vst [vmem:[#allocation10] sm:$0xff] %v1093
    // Predicated region
    $region54: #{tpu_custom_call.1} parent=1 // pred_check
      _
    $region55: #{tpu_custom_call.1} parent=1 // pred_check_branch
      %1096 = sbr.rel (0) target = $region57
    $region56: #{tpu_custom_call.1} parent=1 // pred_region
      %s1098 = ssub.s32 128, 128
      %1099 = vsyncadd [#allocation4], %s1098
      %s1101 = sshll.u32 [#allocation10], 4
      %s1102 = int_to_ptr.vmem [resolvable:$true] %s1101
      %1104 = dma.vmem_to_hbm [thread:$0]  %s1102, 128, %s9, [#allocation4]
    $region57: #{tpu_custom_call.1} parent=1 // pred_fallthru
      _
    // Predicated region
    $region58: #{tpu_custom_call.1} parent=1 // pred_check
      _
    $region59: #{tpu_custom_call.1} parent=1 // pred_check_branch
      %1106 = sbr.rel (0) target = $region61
    $region60: #{tpu_custom_call.1} parent=1 // pred_region
      %1107 = dma.done [#allocation4], 128
    $region61: #{tpu_custom_call.1} parent=1 // pred_fallthru
      _
    %1108 = vsyncpa [#allocation3], 1
    %1109 = vsyncpa [#allocation6], 1
    %1110 = vsyncpa [#allocation9], 1
    %1111 = vsyncpa [#allocation4], 1

</llo_original>
